<compile_context>
chip_gen: v7x
topology: tpu7x:2x2x1
jax: 0.10.0
libtpu: 0.0.40
codegen_flags: <defaults>
</compile_context>

<pallas_src>
import math

import jax
import jax.numpy as jnp
from jax.experimental import pallas as pl
from jax.experimental.pallas import tpu as pltpu


_TARGET_BLOCK_BYTES = 4 * 1024 * 1024   # ~4 MiB blocks (review: raise 2 -> 4-8 MiB)
_SINGLE_BLOCK_BYTES = 1 * 1024 * 1024   # below this: one whole-array block, no grid
_VMEM_LIMIT_BYTES = 32 * 1024 * 1024    # explicit scoped-VMEM budget (safe on v5e/v6e/v7x)
_LANE_CHOICES = (8192, 4096, 2048, 1024, 512, 256, 128)  # widest lane-dense view first


def _sublane_tile(*dtypes):
    """Packed sublane tile: 8 for 32-bit, 16 for bf16/f16, 32 for int8/fp8."""
    min_itemsize = min(jnp.dtype(d).itemsize for d in dtypes)
    return max(8, 32 // max(1, min_itemsize))


def _make_kernel(shift):
    def kernel(x_ref, o_ref):
        # Promote to the output dtype before adding (matches `x + shift`
        # promotion, e.g. int32 + 0.5 -> float32).  `shift` is a compile-time
        # constant baked into the kernel (no SMEM operand / extra spec).
        o_ref[...] = x_ref[...].astype(o_ref.dtype) + jnp.asarray(shift, dtype=o_ref.dtype)
    return kernel


def _pick_row_tile(rows, row_bytes, sub, target_bytes):
    """Rows per block: ~target_bytes blocks, sublane-tile aligned, and >=2
    (preferably an even count of) blocks whenever the array is worth splitting,
    so dimension_semantics=('parallel', ...) keeps both v7x TensorCores busy."""
    total = rows * row_bytes
    if rows <= sub or total <= _SINGLE_BLOCK_BYTES:
        return rows                           # single block: overhead beats splitting
    nblk = max(2, -(-total // target_bytes))  # ceil(total / target), at least 2
    if nblk % 2:                              # even block count -> balanced megacore split
        nblk += 1
    tile = -(-rows // nblk)                   # ceil(rows / nblk)
    tile = max(sub, (tile // sub) * sub)      # round DOWN to the packed sublane tile
    return min(tile, rows)


def _blocked_2d(x2d, shift, out_dtype, *, target_bytes, donate):
    """Gridded elementwise add over a (rows, cols) view; both axes blocked."""
    rows, cols = x2d.shape
    itemsize = max(x2d.dtype.itemsize, jnp.dtype(out_dtype).itemsize)
    sub = _sublane_tile(x2d.dtype, out_dtype)

    # Lane (last-dim) tile: full extent when it fits, else a multiple of 128.
    # Budget assumes each buffer holds at least one padded sublane group (`sub`
    # rows), which keeps even the rows==1 (flattened 1D) case VMEM-safe.
    max_tile_c = max(128, (target_bytes // (itemsize * sub) // 128) * 128)
    tile_c = cols if cols <= max_tile_c else max_tile_c
    tile_r = _pick_row_tile(rows, tile_c * itemsize, sub, target_bytes)

    grid = (pl.cdiv(rows, tile_r), pl.cdiv(cols, tile_c))  # ragged tails masked by Pallas
    alias = {0: 0} if (donate and x2d.dtype == jnp.dtype(out_dtype)) else {}

    return pl.pallas_call(
        _make_kernel(shift),
        out_shape=jax.ShapeDtypeStruct((rows, cols), out_dtype),
        grid_spec=pltpu.PrefetchScalarGridSpec(
            num_scalar_prefetch=0,
            grid=grid,
            in_specs=[pl.BlockSpec((tile_r, tile_c), lambda i, j: (i, j))],
            out_specs=pl.BlockSpec((tile_r, tile_c), lambda i, j: (i, j)),
        ),
        compiler_params=pltpu.CompilerParams(
            dimension_semantics=("parallel", "parallel"),
            vmem_limit_bytes=_VMEM_LIMIT_BYTES),
        input_output_aliases=alias,
    )(x2d)


def shift_forward(x, shift, *, donate=False,
                  target_block_bytes=_TARGET_BLOCK_BYTES,
                  single_block_bytes=_SINGLE_BLOCK_BYTES):
    """Pallas TPU implementation of Shift.forward: elementwise x + shift."""
    x = jnp.asarray(x)
    out_dtype = jnp.result_type(x.dtype, shift)   # PyTorch-like promotion (int + 0.5 -> float)
    orig_shape = x.shape
    n = math.prod(orig_shape) if orig_shape else 1
    if n == 0:
        return x.astype(out_dtype)                # nothing to stream for empty arrays

    in_b = x.dtype.itemsize
    out_b = jnp.dtype(out_dtype).itemsize

    # ---- tiny inputs: one whole-array block, no grid at all ----
    if n * max(in_b, out_b) <= single_block_bytes:
        xs = x if x.ndim >= 1 else x.reshape(1, 1)
        alias = {0: 0} if (donate and x.dtype == jnp.dtype(out_dtype)) else {}
        out = pl.pallas_call(
            _make_kernel(shift),
            out_shape=jax.ShapeDtypeStruct(xs.shape, out_dtype),
            compiler_params=pltpu.CompilerParams(
                vmem_limit_bytes=_VMEM_LIMIT_BYTES),
            input_output_aliases=alias,
        )(xs)
        return out.reshape(orig_shape)

    # ---- everything else: contiguous (free) reshape to a lane-dense 2D view ----
    if n % 128 == 0:
        # Preferred: wide lane-aligned rows (8192-first search).
        lane = next(c for c in _LANE_CHOICES if n % c == 0)
        x2d = x.reshape(n // lane, lane)
    elif x.ndim >= 2:
        # Flatten trailing dims so the last axis is wide (lane-dense stores);
        # both axes are blocked below, so this stays VMEM-safe at any size.
        x2d = x.reshape(orig_shape[0], n // orig_shape[0])
    else:
        # Large 1D array whose length is not a multiple of 128: single wide row,
        # lane axis blocked in multiples of 128 with a masked ragged tail.
        x2d = x.reshape(1, n)

    out2d = _blocked_2d(x2d, shift, out_dtype,
                        target_bytes=target_block_bytes, donate=donate)
    return out2d.reshape(orig_shape)


if __name__ == "__main__":
    key = jax.random.PRNGKey(0)
    k0, k1, k2, k3, k4 = jax.random.split(key, 5)
    shift_value = 0.5   # the constant from Shift.__init__

    # 1) Small NCHW input (module's typical conv-field usage) -> no-grid path.
    x = jax.random.normal(k0, (2, 4, 16, 16), dtype=jnp.float32)
    y = shift_forward(x, shift_value)
    jax.block_until_ready(y)
    assert y.shape == x.shape and y.dtype == x.dtype
    assert jnp.allclose(y, x + shift_value, atol=1e-6)

    # 1b) Same input with the input/output-aliasing option.
    y_alias = shift_forward(x, shift_value, donate=True)
    jax.block_until_ready(y_alias)
    assert jnp.allclose(y_alias, x + shift_value, atol=1e-6)

    # 2) Force the gridded lane-dense fast path on the same small input
    #    (tiny thresholds -> 2D grid with 128-wide lane blocks).
    y_grid = shift_forward(x, shift_value, target_block_bytes=4096, single_block_bytes=0)
    jax.block_until_ready(y_grid)
    assert jnp.allclose(y_grid, x + shift_value, atol=1e-6)

    # 3) Moderate input that takes the default gridded fast path
    #    (2 MiB -> two sublane-aligned blocks -> both v7x TCs get work).
    x3 = jax.random.normal(k1, (512, 1024), dtype=jnp.float32)
    y3 = shift_forward(x3, shift_value)
    jax.block_until_ready(y3)
    assert jnp.allclose(y3, x3 + shift_value, atol=1e-6)

    # 4) Non-128-divisible ND input through the blocked fallback (forced) and
    #    through the small path (default): flattened-2D view, ragged lane tail.
    x4 = jax.random.normal(k2, (3, 5, 7, 11), dtype=jnp.float32)
    y4 = shift_forward(x4, shift_value, target_block_bytes=4096, single_block_bytes=0)
    y4s = shift_forward(x4, shift_value)
    jax.block_until_ready((y4, y4s))
    assert jnp.allclose(y4, x4 + shift_value, atol=1e-6)
    assert jnp.allclose(y4s, x4 + shift_value, atol=1e-6)

    # 5) Non-128-divisible 1D input through the blocked fallback (forced).
    x5 = jax.random.normal(k3, (1037,), dtype=jnp.float32)
    y5 = shift_forward(x5, shift_value, target_block_bytes=4096, single_block_bytes=0)
    jax.block_until_ready(y5)
    assert jnp.allclose(y5, x5 + shift_value, atol=1e-6)

    # 6) Integer input + fractional shift promotes like PyTorch (int32 + 0.5 -> f32).
    x6 = jax.random.randint(k4, (4, 37), -100, 100, dtype=jnp.int32)
    y6 = shift_forward(x6, shift_value)
    jax.block_until_ready(y6)
    assert y6.dtype == jnp.float32
    assert jnp.allclose(y6, x6.astype(jnp.float32) + shift_value, atol=1e-6)

    print("KERNEL_OK")
</pallas_src>

<mosaic_0001>
module attributes {stable_mosaic.version = 11 : i64} {
  func.func @kernel(%arg0: memref<2x4x16x16xf32, #tpu.memory_space<vmem>>, %arg1: memref<2x4x16x16xf32, #tpu.memory_space<vmem>>) attributes {dimension_semantics = [], scalar_prefetch = 0 : i64, scratch_operands = 0 : i64, tpu.core_type = #tpu.core_type<tc>} {
    %c0 = arith.constant 0 : index
    %c0_0 = arith.constant 0 : index
    %c0_1 = arith.constant 0 : index
    %c0_2 = arith.constant 0 : index
    %0 = vector.load %arg0[%c0, %c0_0, %c0_1, %c0_2] : memref<2x4x16x16xf32, #tpu.memory_space<vmem>>, vector<2x4x16x16xf32>
    %cst = arith.constant 5.000000e-01 : f32
    %1 = vector.broadcast %cst : f32 to vector<2x4x16x16xf32>
    %2 = arith.addf %0, %1 : vector<2x4x16x16xf32>
    %c0_3 = arith.constant 0 : index
    %c0_4 = arith.constant 0 : index
    %c0_5 = arith.constant 0 : index
    %c0_6 = arith.constant 0 : index
    %3 = vector.load %arg1[%c0_3, %c0_4, %c0_5, %c0_6] : memref<2x4x16x16xf32, #tpu.memory_space<vmem>>, vector<2x4x16x16xf32>
    tpu.vector_store %arg1[%c0_3, %c0_4, %c0_5, %c0_6], %2 {strides = array<i32>} : memref<2x4x16x16xf32, #tpu.memory_space<vmem>>, vector<2x4x16x16xf32>,
    return
  }
}

</mosaic_0001>

<llo_original>
// kernel: tpu_custom_call.1
$region0: #{tpu_custom_call.1}
  #allocation0 [shape = 'u32[]', space=smem, size = 0x4, offset = 0x4, fixed_abs, tag = 'smem constant byte address 0x4 - core index']
  #allocation1 [shape = 'u32[144,128]{1,0:T(1,128)}', space=vmem, size = 0x12000, scoped, tag = 'internal scratch']
  %s0 = inlined_call_operand.hbm [shape: f32[2,4,16,16], index: 0, kind: input, shape index: {}]
  %s1 = inlined_call_operand.hbm [shape: f32[2,4,16,16], index: 1, kind: output, shape index: {}]
  %s2 = sld [smem:[#allocation0]]
  $region18: #{tpu_custom_call.1} parent=0
    _
  %s4 = ssub.s32 1, %s2
  %s5 = scalar_select 0, %s4, %s2
  $region1: #{tpu_custom_call.1} parent=0
    #allocation2 [shape = 'u8[65536]{0}', space=vmem, size = 0x10000, scoped, tag = 'input window, operand 0, single buffered']
    #allocation3 [shape = 's32[1]{0}', space=sflag, size = 0x4, scoped, tag = 'scoped memory for tpu_custom_call.1']
    #allocation4 [shape = 's32[1]{0}', space=sflag, size = 0x4, scoped, tag = 'scoped memory for tpu_custom_call.1']
    #allocation5 [shape = 'u8[65536]{0}', space=vmem, size = 0x10000, scoped, tag = 'output window, operand 0, single buffered']
    %6 = vsyncpa [#allocation3], 0
    %7 = vsyncpa [#allocation4], 0
    // Predicated region
    $region2: #{tpu_custom_call.1} parent=1 // pred_check
      _
    $region3: #{tpu_custom_call.1} parent=1 // pred_check_branch
      %9 = sbr.rel (0) target = $region5
    $region4: #{tpu_custom_call.1} parent=1 // pred_region
      %s11 = ssub.s32 2048, 2048
      %12 = vsyncadd [#allocation3], %s11
      %s13 = sshll.u32 [#allocation2], 4
      %s14 = int_to_ptr.vmem [resolvable:$true] %s13
      %19 = dma.hbm_to_vmem [thread:$0]  %s0, 2048, %s14, [#allocation3], 128, 128, 8
    $region5: #{tpu_custom_call.1} parent=1 // pred_fallthru
      _
    // Predicated region
    $region6: #{tpu_custom_call.1} parent=1 // pred_check
      _
    $region7: #{tpu_custom_call.1} parent=1 // pred_check_branch
      %21 = sbr.rel (0) target = $region9
    $region8: #{tpu_custom_call.1} parent=1 // pred_region
      %22 = dma.done [#allocation3], 2048
    $region9: #{tpu_custom_call.1} parent=1 // pred_fallthru
      _
    %v23 = vld [vmem:[#allocation2] sm:$0xff]
    %v24 = vld [vmem:[#allocation2 + $0x8] sm:$0xff]
    %v25 = vld [vmem:[#allocation2 + $0x10] sm:$0xff]
    %v26 = vld [vmem:[#allocation2 + $0x18] sm:$0xff]
    %v27 = vld [vmem:[#allocation2 + $0x20] sm:$0xff]
    %v28 = vld [vmem:[#allocation2 + $0x28] sm:$0xff]
    %v29 = vld [vmem:[#allocation2 + $0x30] sm:$0xff]
    %v30 = vld [vmem:[#allocation2 + $0x38] sm:$0xff]
    %v31 = vld [vmem:[#allocation2 + $0x40] sm:$0xff]
    %v32 = vld [vmem:[#allocation2 + $0x48] sm:$0xff]
    %v33 = vld [vmem:[#allocation2 + $0x50] sm:$0xff]
    %v34 = vld [vmem:[#allocation2 + $0x58] sm:$0xff]
    %v35 = vld [vmem:[#allocation2 + $0x60] sm:$0xff]
    %v36 = vld [vmem:[#allocation2 + $0x68] sm:$0xff]
    %v37 = vld [vmem:[#allocation2 + $0x70] sm:$0xff]
    %v38 = vld [vmem:[#allocation2 + $0x78] sm:$0xff]
    %v39 = vadd.f32 %v23, 0.5
    %v40 = vadd.f32 %v24, 0.5
    %v41 = vadd.f32 %v25, 0.5
    %v42 = vadd.f32 %v26, 0.5
    %v43 = vadd.f32 %v27, 0.5
    %v44 = vadd.f32 %v28, 0.5
    %v45 = vadd.f32 %v29, 0.5
    %v46 = vadd.f32 %v30, 0.5
    %v47 = vadd.f32 %v31, 0.5
    %v48 = vadd.f32 %v32, 0.5
    %v49 = vadd.f32 %v33, 0.5
    %v50 = vadd.f32 %v34, 0.5
    %v51 = vadd.f32 %v35, 0.5
    %v52 = vadd.f32 %v36, 0.5
    %v53 = vadd.f32 %v37, 0.5
    %v54 = vadd.f32 %v38, 0.5
    %vm55 = vcmask 130048
    %56 = vst.msk [vmem:[#allocation5] sm:$0xff] %vm55, %v39
    %57 = vst.msk [vmem:[#allocation5 + $0x8] sm:$0xff] %vm55, %v40
    %58 = vst.msk [vmem:[#allocation5 + $0x10] sm:$0xff] %vm55, %v41
    %59 = vst.msk [vmem:[#allocation5 + $0x18] sm:$0xff] %vm55, %v42
    %60 = vst.msk [vmem:[#allocation5 + $0x20] sm:$0xff] %vm55, %v43
    %61 = vst.msk [vmem:[#allocation5 + $0x28] sm:$0xff] %vm55, %v44
    %62 = vst.msk [vmem:[#allocation5 + $0x30] sm:$0xff] %vm55, %v45
    %63 = vst.msk [vmem:[#allocation5 + $0x38] sm:$0xff] %vm55, %v46
    %64 = vst.msk [vmem:[#allocation5 + $0x40] sm:$0xff] %vm55, %v47
    %65 = vst.msk [vmem:[#allocation5 + $0x48] sm:$0xff] %vm55, %v48
    %66 = vst.msk [vmem:[#allocation5 + $0x50] sm:$0xff] %vm55, %v49
    %67 = vst.msk [vmem:[#allocation5 + $0x58] sm:$0xff] %vm55, %v50
    %68 = vst.msk [vmem:[#allocation5 + $0x60] sm:$0xff] %vm55, %v51
    %69 = vst.msk [vmem:[#allocation5 + $0x68] sm:$0xff] %vm55, %v52
    %70 = vst.msk [vmem:[#allocation5 + $0x70] sm:$0xff] %vm55, %v53
    %71 = vst.msk [vmem:[#allocation5 + $0x78] sm:$0xff] %vm55, %v54
    // Predicated region
    $region10: #{tpu_custom_call.1} parent=1 // pred_check
      _
    $region11: #{tpu_custom_call.1} parent=1 // pred_check_branch
      %73 = sbr.rel (0) target = $region13
    $region12: #{tpu_custom_call.1} parent=1 // pred_region
      %s75 = ssub.s32 2048, 2048
      %76 = vsyncadd [#allocation4], %s75
      %s77 = sshll.u32 [#allocation5], 4
      %s78 = int_to_ptr.vmem [resolvable:$true] %s77
      %83 = dma.vmem_to_hbm [thread:$0]  %s78, 2048, %s1, [#allocation4], 128, 128, 8
    $region13: #{tpu_custom_call.1} parent=1 // pred_fallthru
      _
    // Predicated region
    $region14: #{tpu_custom_call.1} parent=1 // pred_check
      _
    $region15: #{tpu_custom_call.1} parent=1 // pred_check_branch
      %85 = sbr.rel (0) target = $region17
    $region16: #{tpu_custom_call.1} parent=1 // pred_region
      %86 = dma.done [#allocation4], 2048
    $region17: #{tpu_custom_call.1} parent=1 // pred_fallthru
      _
    %87 = vsyncpa [#allocation3], 1
    %88 = vsyncpa [#allocation4], 1

</llo_original>
